<compile_context>
chip_gen: v6e
topology: v6e:2x2x1
jax: 0.10.0
libtpu: 0.0.40
codegen_flags: <defaults>
</compile_context>

<pallas_src>
import math

import numpy as np
import jax
import jax.numpy as jnp
from jax.experimental import pallas as pl
from jax.experimental.pallas import tpu as pltpu


def _hadamard_matrix(n: int) -> np.ndarray:
    """Sylvester-construction Hadamard matrix H_n (n must be a power of two)."""
    assert n > 0 and (n & (n - 1)) == 0, "Hadamard size must be a power of two"
    H = np.array([[1.0]], dtype=np.float32)
    while H.shape[0] < n:
        H = np.block([[H, H], [H, -H]]).astype(np.float32)
    return H


def _round_up(x: int, m: int) -> int:
    return ((x + m - 1) // m) * m


def act_down_proj_rotate(x, weight, *, tm=256, tn=256):
    """y = Linear_no_bias( FWHT(x)/sqrt(n) ).

    x      : (batch, seq, n_inter)  activations (any float dtype)
    weight : (hidden, n_inter)      PyTorch nn.Linear layout (out, in)
    returns: (batch, seq, hidden)   in x.dtype
    """
    x_dtype = x.dtype
    b, s, n = x.shape
    hidden, n_w = weight.shape
    assert n_w == n
    assert n > 0 and (n & (n - 1)) == 0, "K=1 Hadamard path needs power-of-two width"

    M = b * s

    # ---- tile selection (sublane-packed bf16 rows, lane-dense outputs) ----
    tm = min(tm, _round_up(M, 16))
    tm = _round_up(tm, 16)
    tn = min(tn, _round_up(hidden, 128))
    tn = _round_up(tn, 128)

    M_pad = _round_up(M, tm)
    H_pad = _round_up(hidden, tn)

    # ---- operand prep: bf16 MXU path, no HBM transposes --------------------
    x2d = x.reshape(M, n).astype(jnp.bfloat16)
    w = weight.astype(jnp.bfloat16)                 # keep (hidden, n) layout
    if M_pad != M:
        x2d = jnp.pad(x2d, ((0, M_pad - M), (0, 0)))
    if H_pad != hidden:
        w = jnp.pad(w, ((0, H_pad - hidden), (0, 0)))

    # Exact +/-1 Hadamard in bf16; normalization folded into the output scale.
    h_mat = jnp.asarray(_hadamard_matrix(n), dtype=jnp.bfloat16)
    scale = float(1.0 / math.sqrt(n))

    grid = (M_pad // tm, H_pad // tn)

    def kernel(x_ref, h_ref, w_ref, o_ref, xh_ref):
        # Rotation computed once per row block, reused across all j tiles.
        @pl.when(pl.program_id(1) == 0)
        def _():
            xh = jnp.dot(x_ref[...], h_ref[...],
                         preferred_element_type=jnp.float32)
            xh_ref[...] = xh.astype(xh_ref.dtype)

        # down_proj: contract last dims (weight stays in (hidden, n) layout).
        y = jax.lax.dot_general(
            xh_ref[...], w_ref[...],
            dimension_numbers=(((1,), (1,)), ((), ())),
            preferred_element_type=jnp.float32)
        o_ref[...] = (y * scale).astype(o_ref.dtype)

    # Generous scoped-VMEM budget (resident H + double-buffered tiles + scratch).
    out_bpe = np.dtype(x_dtype).itemsize
    vmem_needed = (
        2 * n * n * 2          # Hadamard (worst case double-buffered), bf16
        + 2 * tm * n * 2       # x tiles
        + 2 * tn * n * 2       # weight tiles
        + tm * n * 2           # xh scratch
        + 2 * tm * tn * out_bpe
    )
    vmem_limit = int(min(128 * 1024 * 1024,
                         max(2 * vmem_needed, 32 * 1024 * 1024)))

    out2d = pl.pallas_call(
        kernel,
        out_shape=jax.ShapeDtypeStruct((M_pad, H_pad), x_dtype),
        grid_spec=pltpu.PrefetchScalarGridSpec(
            num_scalar_prefetch=0,
            grid=grid,
            in_specs=[
                pl.BlockSpec((tm, n), lambda i, j: (i, 0)),   # x row block
                pl.BlockSpec((n, n), lambda i, j: (0, 0)),    # Hadamard (resident)
                pl.BlockSpec((tn, n), lambda i, j: (j, 0)),   # weight row block
            ],
            out_specs=pl.BlockSpec((tm, tn), lambda i, j: (i, j)),
            scratch_shapes=[pltpu.VMEM((tm, n), jnp.bfloat16)],
        ),
        compiler_params=pltpu.CompilerParams(
            dimension_semantics=("parallel", "arbitrary"),
            vmem_limit_bytes=vmem_limit,
        ),
    )(x2d, h_mat, w)

    return out2d[:M, :hidden].reshape(b, s, hidden)


def _reference(x, weight):
    """Pure-JAX reference mirroring the kernel's bf16->f32 arithmetic."""
    n = x.shape[-1]
    H = jnp.asarray(_hadamard_matrix(n), dtype=jnp.float32)
    xh = jnp.einsum("bsi,ij->bsj", x.astype(jnp.float32), H)
    xh = xh.astype(jnp.bfloat16).astype(jnp.float32)   # mirror bf16 xh scratch
    y = jnp.einsum("bsj,hj->bsh", xh, weight.astype(jnp.float32))
    y = y * np.float32(1.0 / math.sqrt(n))
    return y.astype(x.dtype)


if __name__ == "__main__":
    # Small shapes consistent with a down_proj: intermediate=256 -> hidden=128.
    batch, seq, n_inter, hidden = 2, 8, 256, 128

    key = jax.random.PRNGKey(0)
    kx, kw = jax.random.split(key)
    x = jax.random.normal(kx, (batch, seq, n_inter), dtype=jnp.float32)
    x = x.astype(jnp.bfloat16)
    weight = (jax.random.normal(kw, (hidden, n_inter), dtype=jnp.float32) * 0.02)
    weight = weight.astype(jnp.bfloat16)   # PyTorch Linear layout: (out, in)

    out = act_down_proj_rotate(x, weight)
    out = jax.block_until_ready(out)

    ref = _reference(x, weight)
    assert out.shape == (batch, seq, hidden)
    assert out.dtype == x.dtype
    np.testing.assert_allclose(
        np.asarray(out.astype(jnp.float32)),
        np.asarray(ref.astype(jnp.float32)),
        rtol=2e-2, atol=1e-2)

    print("KERNEL_OK")
</pallas_src>

<mosaic_0001>
module attributes {stable_mosaic.version = 11 : i64} {
  func.func @kernel(%arg0: i32, %arg1: i32, %arg2: memref<16x256xbf16, #tpu.memory_space<vmem>>, %arg3: memref<256x256xbf16, #tpu.memory_space<vmem>>, %arg4: memref<128x256xbf16, #tpu.memory_space<vmem>>, %arg5: memref<16x128xbf16, #tpu.memory_space<vmem>>, %arg6: memref<16x256xbf16, #tpu.memory_space<vmem>>) attributes {dimension_semantics = [#tpu.dimension_semantics<parallel>, #tpu.dimension_semantics<arbitrary>], iteration_bounds = array<i64: 1, 1>, scalar_prefetch = 0 : i64, scratch_operands = 1 : i64, tpu.core_type = #tpu.core_type<tc>, window_params = [{transform_indices = @transform_0, window_bounds = array<i64: 16, 256>}, {pipeline_mode = #tpu.pipeline_mode<synchronous>, transform_indices = @transform_1, window_bounds = array<i64: 256, 256>}, {transform_indices = @transform_2, window_bounds = array<i64: 128, 256>}, {transform_indices = @transform_3, window_bounds = array<i64: 16, 128>}]} {
    %c0_i32 = arith.constant 0 : i32
    %0 = arith.cmpi eq, %arg1, %c0_i32 : i32
    %1 = arith.extui %0 : i1 to i32
    %c0_i32_0 = arith.constant 0 : i32
    %2 = arith.cmpi ne, %1, %c0_i32_0 : i32
    scf.if %2 {
      %c0_7 = arith.constant 0 : index
      %c0_8 = arith.constant 0 : index
      %10 = vector.load %arg2[%c0_7, %c0_8] : memref<16x256xbf16, #tpu.memory_space<vmem>>, vector<16x256xbf16>
      %c0_9 = arith.constant 0 : index
      %c0_10 = arith.constant 0 : index
      %11 = vector.load %arg3[%c0_9, %c0_10] : memref<256x256xbf16, #tpu.memory_space<vmem>>, vector<256x256xbf16>
      %cst_11 = arith.constant dense<0.000000e+00> : vector<16x256xf32>
      %12 = tpu.matmul %10, %11, %cst_11 {dimension_numbers = #tpu.dot_dimension_numbers<[1], [0], [0], [1], [0, 0, 1, 1], [], []>} : vector<16x256xbf16>, vector<256x256xbf16>, vector<16x256xf32> -> vector<16x256xf32>
      %13 = arith.truncf %12 : vector<16x256xf32> to vector<16x256xbf16>
      %c0_12 = arith.constant 0 : index
      %c0_13 = arith.constant 0 : index
      %14 = vector.load %arg6[%c0_12, %c0_13] : memref<16x256xbf16, #tpu.memory_space<vmem>>, vector<16x256xbf16>
      tpu.vector_store %arg6[%c0_12, %c0_13], %13 {strides = array<i32>} : memref<16x256xbf16, #tpu.memory_space<vmem>>, vector<16x256xbf16>,
    } else {
    }
    %c0 = arith.constant 0 : index
    %c0_1 = arith.constant 0 : index
    %3 = vector.load %arg6[%c0, %c0_1] : memref<16x256xbf16, #tpu.memory_space<vmem>>, vector<16x256xbf16>
    %c0_2 = arith.constant 0 : index
    %c0_3 = arith.constant 0 : index
    %4 = vector.load %arg4[%c0_2, %c0_3] : memref<128x256xbf16, #tpu.memory_space<vmem>>, vector<128x256xbf16>
    %cst = arith.constant dense<0.000000e+00> : vector<16x128xf32>
    %5 = tpu.matmul %3, %4, %cst {dimension_numbers = #tpu.dot_dimension_numbers<[1], [1], [0], [0], [0, 0, 1, 0], [], []>} : vector<16x256xbf16>, vector<128x256xbf16>, vector<16x128xf32> -> vector<16x128xf32>
    %cst_4 = arith.constant 6.250000e-02 : f32
    %6 = vector.broadcast %cst_4 : f32 to vector<16x128xf32>
    %7 = arith.mulf %5, %6 : vector<16x128xf32>
    %8 = arith.truncf %7 : vector<16x128xf32> to vector<16x128xbf16>
    %c0_5 = arith.constant 0 : index
    %c0_6 = arith.constant 0 : index
    %9 = vector.load %arg5[%c0_5, %c0_6] : memref<16x128xbf16, #tpu.memory_space<vmem>>, vector<16x128xbf16>
    tpu.vector_store %arg5[%c0_5, %c0_6], %8 {strides = array<i32>} : memref<16x128xbf16, #tpu.memory_space<vmem>>, vector<16x128xbf16>,
    return
  }
  func.func @transform_0(%arg0: i32, %arg1: i32) -> (i32, i32) {
    %c0_i32 = arith.constant 0 : i32
    %c0_i32_0 = arith.constant 0 : i32
    return %arg0, %c0_i32 : i32, i32
  }
  func.func @transform_1(%arg0: i32, %arg1: i32) -> (i32, i32) {
    %c0_i32 = arith.constant 0 : i32
    %c0_i32_0 = arith.constant 0 : i32
    %c0_i32_1 = arith.constant 0 : i32
    return %c0_i32, %c0_i32_0 : i32, i32
  }
  func.func @transform_2(%arg0: i32, %arg1: i32) -> (i32, i32) {
    %c0_i32 = arith.constant 0 : i32
    %c0_i32_0 = arith.constant 0 : i32
    return %arg1, %c0_i32 : i32, i32
  }
  func.func @transform_3(%arg0: i32, %arg1: i32) -> (i32, i32) {
    %c0_i32 = arith.constant 0 : i32
    return %arg0, %arg1 : i32, i32
  }
}

</mosaic_0001>

<llo_original>
// kernel: tpu_custom_call.1
$region0: #{tpu_custom_call.1}
  #allocation0 [shape = 'u32[]', space=smem, size = 0x4, offset = 0x4, fixed_abs, tag = 'smem constant byte address 0x4 - core index']
  #allocation1 [shape = 'u32[144,128]{1,0:T(1,128)}', space=vmem, size = 0x12000, scoped, tag = 'internal scratch']
  #allocation2 [shape = 'bf16[16,256]{1,0:T(8,128)(2,1)}', space=vmem, size = 0x2000, scoped, tag = 'scratch operand']
  %s0 = inlined_call_operand.hbm [shape: bf16[16,256], index: 0, kind: input, shape index: {}]
  %s1 = inlined_call_operand.hbm [shape: bf16[256,256], index: 1, kind: input, shape index: {}]
  %s2 = inlined_call_operand.hbm [shape: bf16[128,256], index: 2, kind: input, shape index: {}]
  %s3 = inlined_call_operand.hbm [shape: bf16[16,128], index: 3, kind: output, shape index: {}]
  %s4 = sld [smem:[#allocation0]]
  $region38: #{tpu_custom_call.1} parent=0
    _
  %s6 = ssub.s32 1, %s4
  %s7 = scalar_select 0, %s6, %s4
  $region1: #{tpu_custom_call.1} parent=0
    #allocation3 [shape = 'u8[8192]{0}', space=vmem, size = 0x2000, scoped, tag = 'input window, operand 0, single buffered']
    #allocation4 [shape = 's32[1]{0}', space=sflag, size = 0x4, scoped, tag = 'scoped memory for tpu_custom_call.1']
    #allocation5 [shape = 's32[1]{0}', space=sflag, size = 0x4, scoped, tag = 'scoped memory for tpu_custom_call.1']
    #allocation6 [shape = 'u8[131072]{0}', space=vmem, size = 0x20000, scoped, tag = 'input window, operand 1, single buffered']
    #allocation7 [shape = 's32[1]{0}', space=sflag, size = 0x4, scoped, tag = 'scoped memory for tpu_custom_call.1']
    #allocation8 [shape = 'u8[65536]{0}', space=vmem, size = 0x10000, scoped, tag = 'input window, operand 2, single buffered']
    #allocation9 [shape = 'u8[4096]{0}', space=vmem, size = 0x1000, scoped, tag = 'output window, operand 0, single buffered']
    %8 = vsyncpa [#allocation4], 0
    %9 = vsyncpa [#allocation7], 0
    %10 = vsyncpa [#allocation5], 0
    // Predicated region
    $region2: #{tpu_custom_call.1} parent=1 // pred_check
      _
    $region3: #{tpu_custom_call.1} parent=1 // pred_check_branch
      %12 = sbr.rel (0) target = $region5
    $region4: #{tpu_custom_call.1} parent=1 // pred_region
      %s14 = ssub.s32 256, 256
      %15 = vsyncadd [#allocation4], %s14
      %s16 = sshll.u32 [#allocation3], 4
      %s17 = int_to_ptr.vmem [resolvable:$true] %s16
      %22 = dma.hbm_to_vmem [thread:$0]  %s0, 256, %s17, [#allocation4], 128, 128, 8
    $region5: #{tpu_custom_call.1} parent=1 // pred_fallthru
      _
    // Predicated region
    $region6: #{tpu_custom_call.1} parent=1 // pred_check
      _
    $region7: #{tpu_custom_call.1} parent=1 // pred_check_branch
      %24 = sbr.rel (0) target = $region9
    $region8: #{tpu_custom_call.1} parent=1 // pred_region
      %s26 = ssub.s32 4096, 4096
      %27 = vsyncadd [#allocation7], %s26
      %s28 = sshll.u32 [#allocation6], 4
      %s29 = int_to_ptr.vmem [resolvable:$true] %s28
      %34 = dma.hbm_to_vmem [thread:$0]  %s1, 4096, %s29, [#allocation7], 128, 128, 8
    $region9: #{tpu_custom_call.1} parent=1 // pred_fallthru
      _
    // Predicated region
    $region10: #{tpu_custom_call.1} parent=1 // pred_check
      _
    $region11: #{tpu_custom_call.1} parent=1 // pred_check_branch
      %36 = sbr.rel (0) target = $region13
    $region12: #{tpu_custom_call.1} parent=1 // pred_region
      %s38 = ssub.s32 2048, 2048
      %39 = vsyncadd [#allocation7], %s38
      %s40 = sshll.u32 [#allocation8], 4
      %s41 = int_to_ptr.vmem [resolvable:$true] %s40
      %46 = dma.hbm_to_vmem [thread:$0]  %s2, 2048, %s41, [#allocation7], 128, 128, 8
    $region13: #{tpu_custom_call.1} parent=1 // pred_fallthru
      _
    // Predicated region
    $region14: #{tpu_custom_call.1} parent=1 // pred_check
      _
    $region15: #{tpu_custom_call.1} parent=1 // pred_check_branch
      %48 = sbr.rel (0) target = $region17
    $region16: #{tpu_custom_call.1} parent=1 // pred_region
      %49 = dma.done [#allocation4], 256
    $region17: #{tpu_custom_call.1} parent=1 // pred_fallthru
      _
    // Predicated region
    $region18: #{tpu_custom_call.1} parent=1 // pred_check
      _
    $region19: #{tpu_custom_call.1} parent=1 // pred_check_branch
      %51 = sbr.rel (0) target = $region21
    $region20: #{tpu_custom_call.1} parent=1 // pred_region
      %52 = dma.done [#allocation7], 4096
    $region21: #{tpu_custom_call.1} parent=1 // pred_fallthru
      _
    // Predicated region
    $region22: #{tpu_custom_call.1} parent=1 // pred_check
      _
    $region23: #{tpu_custom_call.1} parent=1 // pred_check_branch
      %54 = sbr.rel (0) target = $region25
    $region24: #{tpu_custom_call.1} parent=1 // pred_region
      %55 = dma.done [#allocation7], 2048
    $region25: #{tpu_custom_call.1} parent=1 // pred_fallthru
      _
    %p57 = scmp.eq.s32.totalorder 0, 0
    // Predicated region
    $region26: #{tpu_custom_call.1} parent=1 // pred_check
      %p58 = pneg %p57
    $region27: #{tpu_custom_call.1} parent=1 // pred_check_branch
      %60 = sbr.rel (%p58) target = $region29
    $region28: #{tpu_custom_call.1} parent=1 // pred_region
      %v61 = vld [vmem:[#allocation3] sm:$0xff]
      %v62 = vld [vmem:[#allocation3 + $0x8] sm:$0xff]
      %v63 = vld [vmem:[#allocation6] sm:$0xff]
      %v64 = vld [vmem:[#allocation6 + $0x8] sm:$0xff]
      %v65 = vld [vmem:[#allocation6 + $0x10] sm:$0xff]
      %v66 = vld [vmem:[#allocation6 + $0x18] sm:$0xff]
      %v67 = vld [vmem:[#allocation6 + $0x20] sm:$0xff]
      %v68 = vld [vmem:[#allocation6 + $0x28] sm:$0xff]
      %v69 = vld [vmem:[#allocation6 + $0x30] sm:$0xff]
      %v70 = vld [vmem:[#allocation6 + $0x38] sm:$0xff]
      %v71 = vld [vmem:[#allocation6 + $0x40] sm:$0xff]
      %v72 = vld [vmem:[#allocation6 + $0x48] sm:$0xff]
      %v73 = vld [vmem:[#allocation6 + $0x50] sm:$0xff]
      %v74 = vld [vmem:[#allocation6 + $0x58] sm:$0xff]
      %v75 = vld [vmem:[#allocation6 + $0x60] sm:$0xff]
      %v76 = vld [vmem:[#allocation6 + $0x68] sm:$0xff]
      %v77 = vld [vmem:[#allocation6 + $0x70] sm:$0xff]
      %v78 = vld [vmem:[#allocation6 + $0x78] sm:$0xff]
      %v79 = vld [vmem:[#allocation6 + $0x80] sm:$0xff]
      %v80 = vld [vmem:[#allocation6 + $0x88] sm:$0xff]
      %v81 = vld [vmem:[#allocation6 + $0x90] sm:$0xff]
      %v82 = vld [vmem:[#allocation6 + $0x98] sm:$0xff]
      %v83 = vld [vmem:[#allocation6 + $0xa0] sm:$0xff]
      %v84 = vld [vmem:[#allocation6 + $0xa8] sm:$0xff]
      %v85 = vld [vmem:[#allocation6 + $0xb0] sm:$0xff]
      %v86 = vld [vmem:[#allocation6 + $0xb8] sm:$0xff]
      %v87 = vld [vmem:[#allocation6 + $0xc0] sm:$0xff]
      %v88 = vld [vmem:[#allocation6 + $0xc8] sm:$0xff]
      %v89 = vld [vmem:[#allocation6 + $0xd0] sm:$0xff]
      %v90 = vld [vmem:[#allocation6 + $0xd8] sm:$0xff]
      %v91 = vld [vmem:[#allocation6 + $0xe0] sm:$0xff]
      %v92 = vld [vmem:[#allocation6 + $0xe8] sm:$0xff]
      %v93 = vld [vmem:[#allocation6 + $0xf0] sm:$0xff]
      %v94 = vld [vmem:[#allocation6 + $0xf8] sm:$0xff]
      %v97 = vunpack.c.l.b16 %v61
      %v98 = vunpack.c.h.b16 %v61
      %v99 = vunpack.c.l.b16 %v62
      %v100 = vunpack.c.h.b16 %v62
      %v101 = vpack.c.b16 %v99, %v97
      %v102 = vpack.c.b16 %v100, %v98
      %v137 = vunpack.c.l.b16 %v63
      %v138 = vunpack.c.h.b16 %v63
      %v139 = vunpack.c.l.b16 %v64
      %v140 = vunpack.c.h.b16 %v64
      %v141 = vunpack.c.l.b16 %v65
      %v142 = vunpack.c.h.b16 %v65
      %v143 = vunpack.c.l.b16 %v66
      %v144 = vunpack.c.h.b16 %v66
      %v145 = vunpack.c.l.b16 %v67
      %v146 = vunpack.c.h.b16 %v67
      %v147 = vunpack.c.l.b16 %v68
      %v148 = vunpack.c.h.b16 %v68
      %v149 = vunpack.c.l.b16 %v69
      %v150 = vunpack.c.h.b16 %v69
      %v151 = vunpack.c.l.b16 %v70
      %v152 = vunpack.c.h.b16 %v70
      %v153 = vunpack.c.l.b16 %v71
      %v154 = vunpack.c.h.b16 %v71
      %v155 = vunpack.c.l.b16 %v72
      %v156 = vunpack.c.h.b16 %v72
      %v157 = vunpack.c.l.b16 %v73
      %v158 = vunpack.c.h.b16 %v73
      %v159 = vunpack.c.l.b16 %v74
      %v160 = vunpack.c.h.b16 %v74
      %v161 = vunpack.c.l.b16 %v75
      %v162 = vunpack.c.h.b16 %v75
      %v163 = vunpack.c.l.b16 %v76
      %v164 = vunpack.c.h.b16 %v76
      %v165 = vunpack.c.l.b16 %v77
      %v166 = vunpack.c.h.b16 %v77
      %v167 = vunpack.c.l.b16 %v78
      %v168 = vunpack.c.h.b16 %v78
      %v169 = vunpack.c.l.b16 %v79
      %v170 = vunpack.c.h.b16 %v79
      %v171 = vunpack.c.l.b16 %v80
      %v172 = vunpack.c.h.b16 %v80
      %v173 = vunpack.c.l.b16 %v81
      %v174 = vunpack.c.h.b16 %v81
      %v175 = vunpack.c.l.b16 %v82
      %v176 = vunpack.c.h.b16 %v82
      %v177 = vunpack.c.l.b16 %v83
      %v178 = vunpack.c.h.b16 %v83
      %v179 = vunpack.c.l.b16 %v84
      %v180 = vunpack.c.h.b16 %v84
      %v181 = vunpack.c.l.b16 %v85
      %v182 = vunpack.c.h.b16 %v85
      %v183 = vunpack.c.l.b16 %v86
      %v184 = vunpack.c.h.b16 %v86
      %v185 = vunpack.c.l.b16 %v87
      %v186 = vunpack.c.h.b16 %v87
      %v187 = vunpack.c.l.b16 %v88
      %v188 = vunpack.c.h.b16 %v88
      %v189 = vunpack.c.l.b16 %v89
      %v190 = vunpack.c.h.b16 %v89
      %v191 = vunpack.c.l.b16 %v90
      %v192 = vunpack.c.h.b16 %v90
      %v193 = vunpack.c.l.b16 %v91
      %v194 = vunpack.c.h.b16 %v91
      %v195 = vunpack.c.l.b16 %v92
      %v196 = vunpack.c.h.b16 %v92
      %v197 = vunpack.c.l.b16 %v93
      %v198 = vunpack.c.h.b16 %v93
      %v199 = vunpack.c.l.b16 %v94
      %v200 = vunpack.c.h.b16 %v94
      %v201 = vpack.c.b16 %v139, %v137
      %v202 = vpack.c.b16 %v140, %v138
      %v203 = vpack.c.b16 %v143, %v141
      %v204 = vpack.c.b16 %v144, %v142
      %v205 = vpack.c.b16 %v147, %v145
      %v206 = vpack.c.b16 %v148, %v146
      %v207 = vpack.c.b16 %v151, %v149
      %v208 = vpack.c.b16 %v152, %v150
      %v209 = vpack.c.b16 %v155, %v153
      %v210 = vpack.c.b16 %v156, %v154
      %v211 = vpack.c.b16 %v159, %v157
      %v212 = vpack.c.b16 %v160, %v158
      %v213 = vpack.c.b16 %v163, %v161
      %v214 = vpack.c.b16 %v164, %v162
      %v215 = vpack.c.b16 %v167, %v165
      %v216 = vpack.c.b16 %v168, %v166
      %v217 = vpack.c.b16 %v171, %v169
      %v218 = vpack.c.b16 %v172, %v170
      %v219 = vpack.c.b16 %v175, %v173
      %v220 = vpack.c.b16 %v176, %v174
      %v221 = vpack.c.b16 %v179, %v177
      %v222 = vpack.c.b16 %v180, %v178
      %v223 = vpack.c.b16 %v183, %v181
      %v224 = vpack.c.b16 %v184, %v182
      %v225 = vpack.c.b16 %v187, %v185
      %v226 = vpack.c.b16 %v188, %v186
      %v227 = vpack.c.b16 %v191, %v189
      %v228 = vpack.c.b16 %v192, %v190
      %v229 = vpack.c.b16 %v195, %v193
      %v230 = vpack.c.b16 %v196, %v194
      %v231 = vpack.c.b16 %v199, %v197
      %v232 = vpack.c.b16 %v200, %v198
      %265 = vmatprep.subr.bf16.mxu0 %v216
      %266 = vmatpush1.bf16.msra.mxu0 %v215
      %267 = vmatprep.subr.bf16.mxu0 %v214
      %268 = vmatpush1.bf16.msra.mxu0 %v213
      %269 = vmatprep.subr.bf16.mxu0 %v212
      %270 = vmatpush1.bf16.msra.mxu0 %v211
      %271 = vmatprep.subr.bf16.mxu0 %v210
      %272 = vmatpush1.bf16.msra.mxu0 %v209
      %273 = vmatprep.subr.bf16.mxu0 %v208
      %274 = vmatpush1.bf16.msra.mxu0 %v207
      %275 = vmatprep.subr.bf16.mxu0 %v206
      %276 = vmatpush1.bf16.msra.mxu0 %v205
      %277 = vmatprep.subr.bf16.mxu0 %v204
      %278 = vmatpush1.bf16.msra.mxu0 %v203
      %279 = vmatprep.subr.bf16.mxu0 %v202
      %280 = vmatpush1.bf16.msra.mxu0 %v201
      %281 = vmatprep.subr.bf16.mxu0 %v232
      %282 = vmatpush2.bf16.msra.mxu0 %v231
      %283 = vmatprep.subr.bf16.mxu0 %v230
      %284 = vmatpush2.bf16.msra.mxu0 %v229
      %285 = vmatprep.subr.bf16.mxu0 %v228
      %286 = vmatpush2.bf16.msra.mxu0 %v227
      %287 = vmatprep.subr.bf16.mxu0 %v226
      %288 = vmatpush2.bf16.msra.mxu0 %v225
      %289 = vmatprep.subr.bf16.mxu0 %v224
      %290 = vmatpush2.bf16.msra.mxu0 %v223
      %291 = vmatprep.subr.bf16.mxu0 %v222
      %292 = vmatpush2.bf16.msra.mxu0 %v221
      %293 = vmatprep.subr.bf16.mxu0 %v220
      %294 = vmatpush2.bf16.msra.mxu0 %v219
      %295 = vmatprep.subr.bf16.mxu0 %v218
      %296 = vmatpush2.bf16.msra.mxu0 %v217
      %297 = vmatprep.mubr.bf16.mxu0 %v102
      %298 = vmatmul.mubr.bf16.gmra.mxu0 %v101
      %v299 = vpop.f32.mrf.mxu0
      %v300 = vadd.f32 0.0, %v299
      %v301 = vpop.f32.mrf.mxu0
      %v302 = vadd.f32 0.0, %v301
      %v303 = vpop.f32.mrf.mxu0
      %v304 = vadd.f32 0.0, %v303
      %v305 = vpop.f32.mrf.mxu0
      %v306 = vadd.f32 0.0, %v305
      %307 = vdwg.mxu0
      %v308 = vpack.c.bf16 %v304, %v300
      %v309 = vpack.c.bf16 %v306, %v302
      %v312 = vunpack.c.l.b16 %v308
      %v313 = vunpack.c.l.b16 %v309
      %v314 = vunpack.c.h.b16 %v308
      %v315 = vunpack.c.h.b16 %v309
      %v316 = vpack.c.b16 %v313, %v312
      %v317 = vpack.c.b16 %v315, %v314
      %320 = vst [vmem:[#allocation2] sm:$0xff] %v316
      %321 = vst [vmem:[#allocation2 + $0x8] sm:$0xff] %v317
    $region29: #{tpu_custom_call.1} parent=1 // pred_fallthru
      _
    %v322 = vld [vmem:[#allocation2] sm:$0xff]
    %v323 = vld [vmem:[#allocation2 + $0x8] sm:$0xff]
    %v324 = vld [vmem:[#allocation8] sm:$0xff]
    %v325 = vld [vmem:[#allocation8 + $0x8] sm:$0xff]
    %v326 = vld [vmem:[#allocation8 + $0x10] sm:$0xff]
    %v327 = vld [vmem:[#allocation8 + $0x18] sm:$0xff]
    %v328 = vld [vmem:[#allocation8 + $0x20] sm:$0xff]
    %v329 = vld [vmem:[#allocation8 + $0x28] sm:$0xff]
    %v330 = vld [vmem:[#allocation8 + $0x30] sm:$0xff]
    %v331 = vld [vmem:[#allocation8 + $0x38] sm:$0xff]
    %v332 = vld [vmem:[#allocation8 + $0x40] sm:$0xff]
    %v333 = vld [vmem:[#allocation8 + $0x48] sm:$0xff]
    %v334 = vld [vmem:[#allocation8 + $0x50] sm:$0xff]
    %v335 = vld [vmem:[#allocation8 + $0x58] sm:$0xff]
    %v336 = vld [vmem:[#allocation8 + $0x60] sm:$0xff]
    %v337 = vld [vmem:[#allocation8 + $0x68] sm:$0xff]
    %v338 = vld [vmem:[#allocation8 + $0x70] sm:$0xff]
    %v339 = vld [vmem:[#allocation8 + $0x78] sm:$0xff]
    %v342 = vunpack.c.l.b16 %v322
    %v343 = vunpack.c.h.b16 %v322
    %v344 = vunpack.c.l.b16 %v323
    %v345 = vunpack.c.h.b16 %v323
    %v346 = vpack.c.b16 %v344, %v342
    %v347 = vpack.c.b16 %v345, %v343
    %v366 = vunpack.c.l.b16 %v324
    %v367 = vunpack.c.h.b16 %v324
    %v368 = vunpack.c.l.b16 %v325
    %v369 = vunpack.c.h.b16 %v325
    %v370 = vunpack.c.l.b16 %v326
    %v371 = vunpack.c.h.b16 %v326
    %v372 = vunpack.c.l.b16 %v327
    %v373 = vunpack.c.h.b16 %v327
    %v374 = vunpack.c.l.b16 %v328
    %v375 = vunpack.c.h.b16 %v328
    %v376 = vunpack.c.l.b16 %v329
    %v377 = vunpack.c.h.b16 %v329
    %v378 = vunpack.c.l.b16 %v330
    %v379 = vunpack.c.h.b16 %v330
    %v380 = vunpack.c.l.b16 %v331
    %v381 = vunpack.c.h.b16 %v331
    %v382 = vunpack.c.l.b16 %v332
    %v383 = vunpack.c.h.b16 %v332
    %v384 = vunpack.c.l.b16 %v333
    %v385 = vunpack.c.h.b16 %v333
    %v386 = vunpack.c.l.b16 %v334
    %v387 = vunpack.c.h.b16 %v334
    %v388 = vunpack.c.l.b16 %v335
    %v389 = vunpack.c.h.b16 %v335
    %v390 = vunpack.c.l.b16 %v336
    %v391 = vunpack.c.h.b16 %v336
    %v392 = vunpack.c.l.b16 %v337
    %v393 = vunpack.c.h.b16 %v337
    %v394 = vunpack.c.l.b16 %v338
    %v395 = vunpack.c.h.b16 %v338
    %v396 = vunpack.c.l.b16 %v339
    %v397 = vunpack.c.h.b16 %v339
    %v398 = vpack.c.b16 %v368, %v366
    %v399 = vpack.c.b16 %v369, %v367
    %v400 = vpack.c.b16 %v372, %v370
    %v401 = vpack.c.b16 %v373, %v371
    %v402 = vpack.c.b16 %v376, %v374
    %v403 = vpack.c.b16 %v377, %v375
    %v404 = vpack.c.b16 %v380, %v378
    %v405 = vpack.c.b16 %v381, %v379
    %v406 = vpack.c.b16 %v384, %v382
    %v407 = vpack.c.b16 %v385, %v383
    %v408 = vpack.c.b16 %v388, %v386
    %v409 = vpack.c.b16 %v389, %v387
    %v410 = vpack.c.b16 %v392, %v390
    %v411 = vpack.c.b16 %v393, %v391
    %v412 = vpack.c.b16 %v396, %v394
    %v413 = vpack.c.b16 %v397, %v395
    %430 = vmatprep.subr.bf16.mxu0 %v413
    %431 = vmatpush1.bf16.xpose.msra.mxu0 %v412
    %432 = vmatprep.subr.bf16.mxu0 %v411
    %433 = vmatpush1.bf16.xpose.msra.mxu0 %v410
    %434 = vmatprep.subr.bf16.mxu0 %v409
    %435 = vmatpush1.bf16.xpose.msra.mxu0 %v408
    %436 = vmatprep.subr.bf16.mxu0 %v407
    %437 = vmatpush1.bf16.xpose.msra.mxu0 %v406
    %438 = vmatprep.subr.bf16.mxu0 %v405
    %439 = vmatpush1.bf16.xpose.msra.mxu0 %v404
    %440 = vmatprep.subr.bf16.mxu0 %v403
    %441 = vmatpush1.bf16.xpose.msra.mxu0 %v402
    %442 = vmatprep.subr.bf16.mxu0 %v401
    %443 = vmatpush1.bf16.xpose.msra.mxu0 %v400
    %444 = vmatprep.subr.bf16.mxu0 %v399
    %445 = vmatpush1.bf16.xpose.msra.mxu0 %v398
    %446 = vmatprep.subr.bf16.mxu0 0
    %447 = vmatpush2.bf16.xpose.msra.mxu0 0
    %448 = vmatprep.subr.bf16.mxu0 0
    %449 = vmatpush2.bf16.xpose.msra.mxu0 0
    %450 = vmatprep.subr.bf16.mxu0 0
    %451 = vmatpush2.bf16.xpose.msra.mxu0 0
    %452 = vmatprep.subr.bf16.mxu0 0
    %453 = vmatpush2.bf16.xpose.msra.mxu0 0
    %454 = vmatprep.subr.bf16.mxu0 0
    %455 = vmatpush2.bf16.xpose.msra.mxu0 0
    %456 = vmatprep.subr.bf16.mxu0 0
    %457 = vmatpush2.bf16.xpose.msra.mxu0 0
    %458 = vmatprep.subr.bf16.mxu0 0
    %459 = vmatpush2.bf16.xpose.msra.mxu0 0
    %460 = vmatprep.subr.bf16.mxu0 0
    %461 = vmatpush2.bf16.xpose.msra.mxu0 0
    %462 = vmatprep.mubr.bf16.mxu0 %v347
    %463 = vmatmul.mubr.bf16.gmra.mxu0 %v346
    %v464 = vpop.f32.mrf.mxu0
    %v465 = vadd.f32 0.0, %v464
    %v466 = vpop.f32.mrf.mxu0
    %v467 = vpop.f32.mrf.mxu0
    %v468 = vadd.f32 0.0, %v467
    %v469 = vpop.f32.mrf.mxu0
    %470 = vdwg.mxu0
    %v471 = vmul.f32 %v465, 0.0625
    %v472 = vmul.f32 %v468, 0.0625
    %v473 = vpack.c.bf16 %v472, %v471
    %v475 = vunpack.c.l.b16 %v473
    %v476 = vunpack.c.h.b16 %v473
    %v477 = vpack.c.b16 %v475, %v475
    %v478 = vpack.c.b16 %v476, %v476
    %481 = vst [vmem:[#allocation9] sm:$0xf] %v477
    %482 = vst [vmem:[#allocation9 + $0x4] sm:$0xf] %v478
    // Predicated region
    $region30: #{tpu_custom_call.1} parent=1 // pred_check
      _
    $region31: #{tpu_custom_call.1} parent=1 // pred_check_branch
      %484 = sbr.rel (0) target = $region33
    $region32: #{tpu_custom_call.1} parent=1 // pred_region
      %s486 = ssub.s32 128, 128
      %487 = vsyncadd [#allocation5], %s486
      %s488 = sshll.u32 [#allocation9], 4
      %s489 = int_to_ptr.vmem [resolvable:$true] %s488
      %494 = dma.vmem_to_hbm [thread:$0]  %s489, 128, %s3, [#allocation5], 64, 64, 4
    $region33: #{tpu_custom_call.1} parent=1 // pred_fallthru
      _
    // Predicated region
    $region34: #{tpu_custom_call.1} parent=1 // pred_check
      _
    $region35: #{tpu_custom_call.1} parent=1 // pred_check_branch
      %496 = sbr.rel (0) target = $region37
    $region36: #{tpu_custom_call.1} parent=1 // pred_region
      %497 = dma.done [#allocation5], 128
    $region37: #{tpu_custom_call.1} parent=1 // pred_fallthru
      _
    %498 = vsyncpa [#allocation4], 1
    %499 = vsyncpa [#allocation7], 1
    %500 = vsyncpa [#allocation5], 1

</llo_original>
